<compile_context>
chip_gen: v7x
topology: tpu7x:2x2x1
jax: 0.10.0
libtpu: 0.0.40
codegen_flags: <defaults>
</compile_context>

<pallas_src>
import math

import jax
import jax.numpy as jnp
from jax.experimental import pallas as pl
from jax.experimental.pallas import tpu as pltpu


def _round_up(x, m):
    return (x + m - 1) // m * m


def _vmem_capacity_bytes():
    """Best-effort VMEM capacity query; conservative (v7x) fallback."""
    try:
        info = pltpu.get_tpu_info()
        cap = getattr(info, "vmem_capacity_bytes", None)
        if cap:
            return int(cap)
    except Exception:
        pass
    return 64 * 1024 * 1024


def _ffn_kernel(x_ref, w1_ref, b1_ref, w2_ref, b2_ref, o_ref, acc_ref):
    # x_ref : (TM, Cp) bf16     w1_ref: (Cp, TH) bf16    b1_ref: (1, TH) f32
    # w2_ref: (TH, Cp) bf16     b2_ref: (1, Cp)  f32
    # o_ref : (TM, Cp) out dt   acc_ref: (TM, Cp) f32 scratch
    h = pl.program_id(1)

    @pl.when(h == 0)
    def _():
        # Seed the accumulator with the broadcast output bias: removes the
        # separate (TM, Cp) add from the epilogue.
        acc_ref[...] = jnp.broadcast_to(b2_ref[...], acc_ref.shape)

    # First matmul tile + bias + ReLU (f32 accumulation on the MXU).
    hid = jnp.dot(x_ref[...], w1_ref[...], preferred_element_type=jnp.float32)
    hid = jnp.maximum(hid + b1_ref[...], 0.0)

    # Second matmul tile, accumulated over the hidden (reduction) axis.
    acc_ref[...] += jnp.dot(hid.astype(w2_ref.dtype), w2_ref[...],
                            preferred_element_type=jnp.float32)

    @pl.when(h == pl.num_programs(1) - 1)
    def _():
        o_ref[...] = acc_ref[...].astype(o_ref.dtype)


def plan_ffn(M, C, H, *, out_dtype=jnp.float32, tm=512, th=512):
    """Pick padded sizes, tiles and a per-generation VMEM budget."""
    Cp = _round_up(C, 128)
    out_itemsize = jnp.dtype(out_dtype).itemsize

    # VMEM cap per generation: ~100 MiB on 128 MiB parts (v5e/v6e), 64 MiB
    # on v7x (or when the query is unavailable).
    capacity = _vmem_capacity_bytes()
    if capacity >= 128 * 1024 * 1024:
        vmem_cap = 100 * 1024 * 1024
    else:
        vmem_cap = min(capacity, 64 * 1024 * 1024)

    # Row tile: big enough to be MXU-bound (arith intensity ~TM FLOPs/byte on
    # weight traffic), clamped to the problem size.
    TM = min(_round_up(tm, 128), _round_up(M, 128))
    Mp = _round_up(M, TM)
    # Give both TensorCores work on multi-TC chips (v7x) when M is small.
    while Mp // TM < 2 and TM > 128:
        TM = _round_up(TM // 2, 128)
        Mp = _round_up(M, TM)

    def tile_bytes(tm_, th_):
        return (2 * tm_ * Cp * 2                # x tiles (bf16, double buffered)
                + 2 * Cp * th_ * 2              # W1 tiles (bf16)
                + 2 * th_ * Cp * 2              # W2 tiles (bf16)
                + 2 * 8 * th_ * 4               # b1 (f32, sublane padded)
                + 2 * 8 * Cp * 4                # b2 (f32, sublane padded)
                + 2 * tm_ * Cp * out_itemsize   # output tiles
                + tm_ * Cp * 4)                 # f32 accumulator scratch

    # Prefer fully VMEM-resident weights (TH = Hp): grid collapses to
    # (Mp//TM, 1), W1/W2 are DMA'd once instead of once per row tile.
    Hp_full = _round_up(H, 128)
    if tile_bytes(TM, Hp_full) <= int(0.9 * vmem_cap):
        TH, Hp = Hp_full, Hp_full
    else:
        TH = min(_round_up(th, 128), Hp_full)
        while tile_bytes(TM, TH) > int(0.9 * vmem_cap) and TH > 128:
            TH = _round_up(TH // 2, 128)
        Hp = _round_up(H, TH)

    vmem_limit = int(min(max(2 * tile_bytes(TM, TH), 16 * 1024 * 1024),
                         vmem_cap))
    return dict(C=C, H=H, Cp=Cp, Hp=Hp, TM=TM, TH=TH,
                out_dtype=out_dtype, vmem_limit=vmem_limit)


def prepare_ffn_params(w1, b1, w2, b2, plan):
    """Cast to bf16 + zero-pad ONCE (model init), not on every forward call."""
    C, H, Cp, Hp = plan["C"], plan["H"], plan["Cp"], plan["Hp"]
    w1p = jnp.pad(w1.astype(jnp.bfloat16), ((0, Cp - C), (0, Hp - H)))
    w2p = jnp.pad(w2.astype(jnp.bfloat16), ((0, Hp - H), (0, Cp - C)))
    b1p = jnp.pad(b1.astype(jnp.float32), (0, Hp - H)).reshape(1, Hp)
    b2p = jnp.pad(b2.astype(jnp.float32), (0, Cp - C)).reshape(1, Cp)
    return w1p, b1p, w2p, b2p


def feed_forward(x, params, plan):
    """x: (..., C). params from prepare_ffn_params. Returns (..., C)."""
    w1p, b1p, w2p, b2p = params
    C, Cp, Hp = plan["C"], plan["Cp"], plan["Hp"]
    TM, TH = plan["TM"], plan["TH"]

    lead = x.shape[:-1]
    M = int(math.prod(lead))
    Mp = _round_up(M, TM)

    # bf16 activations for the MXU; zero padding keeps the math exact in the
    # rows/cols we keep (padded rows are garbage and sliced off below).
    x2d = jnp.pad(x.reshape(M, C).astype(jnp.bfloat16),
                  ((0, Mp - M), (0, Cp - C)))

    grid = (Mp // TM, Hp // TH)

    out = pl.pallas_call(
        _ffn_kernel,
        out_shape=jax.ShapeDtypeStruct((Mp, Cp), plan["out_dtype"]),
        grid=grid,
        in_specs=[
            pl.BlockSpec((TM, Cp), lambda i, h: (i, 0)),   # x row tile
            pl.BlockSpec((Cp, TH), lambda i, h: (0, h)),   # W1 column tile
            pl.BlockSpec((1, TH), lambda i, h: (0, h)),    # b1 slice
            pl.BlockSpec((TH, Cp), lambda i, h: (h, 0)),   # W2 row tile
            pl.BlockSpec((1, Cp), lambda i, h: (0, 0)),    # b2 (full)
        ],
        out_specs=pl.BlockSpec((TM, Cp), lambda i, h: (i, 0)),
        scratch_shapes=[pltpu.VMEM((TM, Cp), jnp.float32)],
        compiler_params=pltpu.CompilerParams(
            dimension_semantics=("parallel", "arbitrary"),
            vmem_limit_bytes=plan["vmem_limit"]),
    )(x2d, w1p, b1p, w2p, b2p)

    return out[:M, :C].reshape(*lead, C)


if __name__ == "__main__":
    # Small transformer-like shapes: batch=2, seq=8, num_embed=32 (hidden=128).
    B, T, C = 2, 8, 32
    H = 4 * C

    key = jax.random.PRNGKey(0)
    kx, kw1, kb1, kw2, kb2 = jax.random.split(key, 5)

    x = jax.random.normal(kx, (B, T, C), dtype=jnp.float32)
    # Deterministic, PyTorch-Linear-like init (uniform in +-1/sqrt(fan_in)).
    w1 = jax.random.uniform(kw1, (C, H), jnp.float32, -1.0, 1.0) / jnp.sqrt(C)
    b1 = jax.random.uniform(kb1, (H,), jnp.float32, -1.0, 1.0) / jnp.sqrt(C)
    w2 = jax.random.uniform(kw2, (H, C), jnp.float32, -1.0, 1.0) / jnp.sqrt(H)
    b2 = jax.random.uniform(kb2, (C,), jnp.float32, -1.0, 1.0) / jnp.sqrt(H)

    # Plan tiles / VMEM budget once, pad + cast weights once ("model init").
    plan = plan_ffn(B * T, C, H, out_dtype=jnp.float32)
    params = jax.block_until_ready(prepare_ffn_params(w1, b1, w2, b2, plan))

    y = feed_forward(x, params, plan)
    jax.block_until_ready(y)
    y2d = y.reshape(-1, C)

    # Reference mirroring the kernel's numerics (bf16 operands, f32 accum).
    xb = x.reshape(-1, C).astype(jnp.bfloat16).astype(jnp.float32)
    w1b = w1.astype(jnp.bfloat16).astype(jnp.float32)
    w2b = w2.astype(jnp.bfloat16).astype(jnp.float32)
    hid = jnp.maximum(xb @ w1b + b1, 0.0)
    ref = hid.astype(jnp.bfloat16).astype(jnp.float32) @ w2b + b2
    assert jnp.allclose(y2d, ref, atol=2e-2, rtol=2e-2), (
        float(jnp.max(jnp.abs(y2d - ref))))

    # Loose check against the pure-f32 reference (bf16 rounding error budget).
    ref_f32 = jnp.maximum(x.reshape(-1, C) @ w1 + b1, 0.0) @ w2 + b2
    assert jnp.allclose(y2d, ref_f32, atol=1e-1, rtol=1e-1), (
        float(jnp.max(jnp.abs(y2d - ref_f32))))

    print("KERNEL_OK")
</pallas_src>

<mosaic_0001>
module attributes {stable_mosaic.version = 11 : i64} {
  func.func @_ffn_kernel(%arg0: i32, %arg1: i32, %arg2: memref<128x128xbf16, #tpu.memory_space<vmem>>, %arg3: memref<128x128xbf16, #tpu.memory_space<vmem>>, %arg4: memref<1x128xf32, #tpu.memory_space<vmem>>, %arg5: memref<128x128xbf16, #tpu.memory_space<vmem>>, %arg6: memref<1x128xf32, #tpu.memory_space<vmem>>, %arg7: memref<128x128xf32, #tpu.memory_space<vmem>>, %arg8: memref<128x128xf32, #tpu.memory_space<vmem>>) attributes {dimension_semantics = [#tpu.dimension_semantics<parallel>, #tpu.dimension_semantics<arbitrary>], iteration_bounds = array<i64: 1, 1>, scalar_prefetch = 0 : i64, scratch_operands = 1 : i64, tpu.core_type = #tpu.core_type<tc>, window_params = [{transform_indices = @transform_0, window_bounds = array<i64: 128, 128>}, {transform_indices = @transform_1, window_bounds = array<i64: 128, 128>}, {transform_indices = @transform_2, window_bounds = array<i64: 1, 128>}, {transform_indices = @transform_3, window_bounds = array<i64: 128, 128>}, {pipeline_mode = #tpu.pipeline_mode<synchronous>, transform_indices = @transform_4, window_bounds = array<i64: 1, 128>}, {transform_indices = @transform_5, window_bounds = array<i64: 128, 128>}]} {
    %c0_i32 = arith.constant 0 : i32
    %0 = arith.cmpi eq, %arg1, %c0_i32 : i32
    %1 = arith.extui %0 : i1 to i32
    %c0_i32_0 = arith.constant 0 : i32
    %2 = arith.cmpi ne, %1, %c0_i32_0 : i32
    scf.if %2 {
      %c0_16 = arith.constant 0 : index
      %c0_17 = arith.constant 0 : index
      %20 = vector.load %arg6[%c0_16, %c0_17] : memref<1x128xf32, #tpu.memory_space<vmem>>, vector<1x128xf32>
      %21 = vector.shape_cast %20 : vector<1x128xf32> to vector<1x128xf32>
      %22 = vector.broadcast %21 : vector<1x128xf32> to vector<128x128xf32>
      %c0_18 = arith.constant 0 : index
      %c0_19 = arith.constant 0 : index
      %23 = vector.load %arg8[%c0_18, %c0_19] : memref<128x128xf32, #tpu.memory_space<vmem>>, vector<128x128xf32>
      tpu.vector_store %arg8[%c0_18, %c0_19], %22 {strides = array<i32>} : memref<128x128xf32, #tpu.memory_space<vmem>>, vector<128x128xf32>,
    } else {
    }
    %c0 = arith.constant 0 : index
    %c0_1 = arith.constant 0 : index
    %3 = vector.load %arg2[%c0, %c0_1] : memref<128x128xbf16, #tpu.memory_space<vmem>>, vector<128x128xbf16>
    %c0_2 = arith.constant 0 : index
    %c0_3 = arith.constant 0 : index
    %4 = vector.load %arg3[%c0_2, %c0_3] : memref<128x128xbf16, #tpu.memory_space<vmem>>, vector<128x128xbf16>
    %cst = arith.constant dense<0.000000e+00> : vector<128x128xf32>
    %5 = tpu.matmul %3, %4, %cst {dimension_numbers = #tpu.dot_dimension_numbers<[1], [0], [0], [1], [0, 0, 1, 1], [], []>} : vector<128x128xbf16>, vector<128x128xbf16>, vector<128x128xf32> -> vector<128x128xf32>
    %c0_4 = arith.constant 0 : index
    %c0_5 = arith.constant 0 : index
    %6 = vector.load %arg4[%c0_4, %c0_5] : memref<1x128xf32, #tpu.memory_space<vmem>>, vector<1x128xf32>
    %7 = vector.broadcast %6 : vector<1x128xf32> to vector<128x128xf32>
    %8 = arith.addf %5, %7 : vector<128x128xf32>
    %cst_6 = arith.constant 0.000000e+00 : f32
    %9 = vector.broadcast %cst_6 : f32 to vector<128x128xf32>
    %10 = arith.maximumf %8, %9 : vector<128x128xf32>
    %c0_7 = arith.constant 0 : index
    %c0_8 = arith.constant 0 : index
    %11 = vector.load %arg8[%c0_7, %c0_8] : memref<128x128xf32, #tpu.memory_space<vmem>>, vector<128x128xf32>
    %12 = arith.truncf %10 : vector<128x128xf32> to vector<128x128xbf16>
    %c0_9 = arith.constant 0 : index
    %c0_10 = arith.constant 0 : index
    %13 = vector.load %arg5[%c0_9, %c0_10] : memref<128x128xbf16, #tpu.memory_space<vmem>>, vector<128x128xbf16>
    %cst_11 = arith.constant dense<0.000000e+00> : vector<128x128xf32>
    %14 = tpu.matmul %12, %13, %cst_11 {dimension_numbers = #tpu.dot_dimension_numbers<[1], [0], [0], [1], [0, 0, 1, 1], [], []>} : vector<128x128xbf16>, vector<128x128xbf16>, vector<128x128xf32> -> vector<128x128xf32>
    %15 = arith.addf %11, %14 : vector<128x128xf32>
    %c0_12 = arith.constant 0 : index
    %c0_13 = arith.constant 0 : index
    %16 = vector.load %arg8[%c0_12, %c0_13] : memref<128x128xf32, #tpu.memory_space<vmem>>, vector<128x128xf32>
    tpu.vector_store %arg8[%c0_12, %c0_13], %15 {strides = array<i32>} : memref<128x128xf32, #tpu.memory_space<vmem>>, vector<128x128xf32>,
    %c0_i32_14 = arith.constant 0 : i32
    %17 = arith.cmpi eq, %arg1, %c0_i32_14 : i32
    %18 = arith.extui %17 : i1 to i32
    %c0_i32_15 = arith.constant 0 : i32
    %19 = arith.cmpi ne, %18, %c0_i32_15 : i32
    scf.if %19 {
      %c0_16 = arith.constant 0 : index
      %c0_17 = arith.constant 0 : index
      %20 = vector.load %arg8[%c0_16, %c0_17] : memref<128x128xf32, #tpu.memory_space<vmem>>, vector<128x128xf32>
      %c0_18 = arith.constant 0 : index
      %c0_19 = arith.constant 0 : index
      %21 = vector.load %arg7[%c0_18, %c0_19] : memref<128x128xf32, #tpu.memory_space<vmem>>, vector<128x128xf32>
      tpu.vector_store %arg7[%c0_18, %c0_19], %20 {strides = array<i32>} : memref<128x128xf32, #tpu.memory_space<vmem>>, vector<128x128xf32>,
    } else {
    }
    return
  }
  func.func @transform_0(%arg0: i32, %arg1: i32) -> (i32, i32) {
    %c0_i32 = arith.constant 0 : i32
    %c0_i32_0 = arith.constant 0 : i32
    return %arg0, %c0_i32 : i32, i32
  }
  func.func @transform_1(%arg0: i32, %arg1: i32) -> (i32, i32) {
    %c0_i32 = arith.constant 0 : i32
    %c0_i32_0 = arith.constant 0 : i32
    return %c0_i32, %arg1 : i32, i32
  }
  func.func @transform_2(%arg0: i32, %arg1: i32) -> (i32, i32) {
    %c0_i32 = arith.constant 0 : i32
    %c0_i32_0 = arith.constant 0 : i32
    return %c0_i32, %arg1 : i32, i32
  }
  func.func @transform_3(%arg0: i32, %arg1: i32) -> (i32, i32) {
    %c0_i32 = arith.constant 0 : i32
    %c0_i32_0 = arith.constant 0 : i32
    return %arg1, %c0_i32 : i32, i32
  }
  func.func @transform_4(%arg0: i32, %arg1: i32) -> (i32, i32) {
    %c0_i32 = arith.constant 0 : i32
    %c0_i32_0 = arith.constant 0 : i32
    %c0_i32_1 = arith.constant 0 : i32
    return %c0_i32, %c0_i32_0 : i32, i32
  }
  func.func @transform_5(%arg0: i32, %arg1: i32) -> (i32, i32) {
    %c0_i32 = arith.constant 0 : i32
    %c0_i32_0 = arith.constant 0 : i32
    return %arg0, %c0_i32 : i32, i32
  }
}

</mosaic_0001>

<llo_original>
// kernel: tpu_custom_call.1
$region0: #{tpu_custom_call.1}
  #allocation0 [shape = 'u32[]', space=smem, size = 0x4, offset = 0x4, fixed_abs, tag = 'smem constant byte address 0x4 - core index']
  #allocation1 [shape = 'u32[144,128]{1,0:T(1,128)}', space=vmem, size = 0x12000, scoped, tag = 'internal scratch']
  #allocation2 [shape = 'f32[128,128]{1,0:T(8,128)}', space=vmem, size = 0x10000, scoped, tag = 'scratch operand']
  %s0 = inlined_call_operand.hbm [shape: bf16[128,128], index: 0, kind: input, shape index: {}]
  %s1 = inlined_call_operand.hbm [shape: bf16[128,128], index: 1, kind: input, shape index: {}]
  %s2 = inlined_call_operand.vmem [shape: f32[1,128], index: 2, kind: input, shape index: {}]
  %s3 = inlined_call_operand.hbm [shape: bf16[128,128], index: 3, kind: input, shape index: {}]
  %s4 = inlined_call_operand.vmem [shape: f32[1,128], index: 4, kind: input, shape index: {}]
  %s5 = inlined_call_operand.hbm [shape: f32[128,128], index: 5, kind: output, shape index: {}]
  %s6 = sld [smem:[#allocation0]]
  $region50: #{tpu_custom_call.1} parent=0
    _
  %s8 = ssub.s32 1, %s6
  %s9 = scalar_select 0, %s8, %s6
  $region1: #{tpu_custom_call.1} parent=0
    #allocation3 [shape = 'u8[32768]{0}', space=vmem, size = 0x8000, scoped, tag = 'input window, operand 0, single buffered']
    #allocation4 [shape = 's32[1]{0}', space=sflag, size = 0x4, scoped, tag = 'scoped memory for tpu_custom_call.1']
    #allocation5 [shape = 's32[1]{0}', space=sflag, size = 0x4, scoped, tag = 'scoped memory for tpu_custom_call.1']
    #allocation6 [shape = 'u8[32768]{0}', space=vmem, size = 0x8000, scoped, tag = 'input window, operand 1, single buffered']
    #allocation7 [shape = 's32[1]{0}', space=sflag, size = 0x4, scoped, tag = 'scoped memory for tpu_custom_call.1']
    #allocation8 [shape = 'u8[32768]{0}', space=vmem, size = 0x8000, scoped, tag = 'input window, operand 3, single buffered']
    #allocation9 [shape = 'u8[65536]{0}', space=vmem, size = 0x10000, scoped, tag = 'output window, operand 0, single buffered']
    %10 = vsyncpa [#allocation4], 0
    %11 = vsyncpa [#allocation7], 0
    %12 = vsyncpa [#allocation5], 0
    // Predicated region
    $region2: #{tpu_custom_call.1} parent=1 // pred_check
      _
    $region3: #{tpu_custom_call.1} parent=1 // pred_check_branch
      %14 = sbr.rel (0) target = $region5
    $region4: #{tpu_custom_call.1} parent=1 // pred_region
      %s16 = ssub.s32 1024, 1024
      %17 = vsyncadd [#allocation4], %s16
      %s18 = sshll.u32 [#allocation3], 4
      %s19 = int_to_ptr.vmem [resolvable:$true] %s18
      %24 = dma.hbm_to_vmem [thread:$0]  %s0, 1024, %s19, [#allocation4], 64, 64, 4
    $region5: #{tpu_custom_call.1} parent=1 // pred_fallthru
      _
    // Predicated region
    $region6: #{tpu_custom_call.1} parent=1 // pred_check
      _
    $region7: #{tpu_custom_call.1} parent=1 // pred_check_branch
      %26 = sbr.rel (0) target = $region9
    $region8: #{tpu_custom_call.1} parent=1 // pred_region
      %s28 = ssub.s32 1024, 1024
      %29 = vsyncadd [#allocation7], %s28
      %s30 = sshll.u32 [#allocation6], 4
      %s31 = int_to_ptr.vmem [resolvable:$true] %s30
      %36 = dma.hbm_to_vmem [thread:$0]  %s1, 1024, %s31, [#allocation7], 64, 64, 4
    $region9: #{tpu_custom_call.1} parent=1 // pred_fallthru
      _
    // Predicated region
    $region10: #{tpu_custom_call.1} parent=1 // pred_check
      _
    $region11: #{tpu_custom_call.1} parent=1 // pred_check_branch
      %38 = sbr.rel (0) target = $region13
    $region12: #{tpu_custom_call.1} parent=1 // pred_region
      _
    $region13: #{tpu_custom_call.1} parent=1 // pred_fallthru
      _
    // Predicated region
    $region14: #{tpu_custom_call.1} parent=1 // pred_check
      _
    $region15: #{tpu_custom_call.1} parent=1 // pred_check_branch
      %40 = sbr.rel (0) target = $region17
    $region16: #{tpu_custom_call.1} parent=1 // pred_region
      %s42 = ssub.s32 1024, 1024
      %43 = vsyncadd [#allocation7], %s42
      %s44 = sshll.u32 [#allocation8], 4
      %s45 = int_to_ptr.vmem [resolvable:$true] %s44
      %50 = dma.hbm_to_vmem [thread:$0]  %s3, 1024, %s45, [#allocation7], 64, 64, 4
    $region17: #{tpu_custom_call.1} parent=1 // pred_fallthru
      _
    // Predicated region
    $region18: #{tpu_custom_call.1} parent=1 // pred_check
      _
    $region19: #{tpu_custom_call.1} parent=1 // pred_check_branch
      %52 = sbr.rel (0) target = $region21
    $region20: #{tpu_custom_call.1} parent=1 // pred_region
      _
    $region21: #{tpu_custom_call.1} parent=1 // pred_fallthru
      _
    // Predicated region
    $region22: #{tpu_custom_call.1} parent=1 // pred_check
      _
    $region23: #{tpu_custom_call.1} parent=1 // pred_check_branch
      %54 = sbr.rel (0) target = $region25
    $region24: #{tpu_custom_call.1} parent=1 // pred_region
      %55 = dma.done [#allocation4], 1024
    $region25: #{tpu_custom_call.1} parent=1 // pred_fallthru
      _
    // Predicated region
    $region26: #{tpu_custom_call.1} parent=1 // pred_check
      _
    $region27: #{tpu_custom_call.1} parent=1 // pred_check_branch
      %57 = sbr.rel (0) target = $region29
    $region28: #{tpu_custom_call.1} parent=1 // pred_region
      %58 = dma.done [#allocation7], 1024
    $region29: #{tpu_custom_call.1} parent=1 // pred_fallthru
      _
    // Predicated region
    $region30: #{tpu_custom_call.1} parent=1 // pred_check
      _
    $region31: #{tpu_custom_call.1} parent=1 // pred_check_branch
      %60 = sbr.rel (0) target = $region33
    $region32: #{tpu_custom_call.1} parent=1 // pred_region
      %61 = dma.done [#allocation7], 1024
    $region33: #{tpu_custom_call.1} parent=1 // pred_fallthru
      _
    %p63 = scmp.eq.s32.totalorder 0, 0
    // Predicated region
    $region34: #{tpu_custom_call.1} parent=1 // pred_check
      %p64 = pneg %p63
    $region35: #{tpu_custom_call.1} parent=1 // pred_check_branch
      %66 = sbr.rel (%p64) target = $region37
    $region36: #{tpu_custom_call.1} parent=1 // pred_region
      %v67 = vld [vmem:[%s4] sm:$0x1]
      %v69 = vlaneseq
      %v70 = vshrl.u32 %v69, 7
      %v71 = vsub.s32 0, %v70
      %v72 = vrot.slane %v67, %v71
      %74 = vst [vmem:[#allocation2] sm:$0xff] %v72
      %75 = vst [vmem:[#allocation2 + $0x8] sm:$0xff] %v72
      %76 = vst [vmem:[#allocation2 + $0x10] sm:$0xff] %v72
      %77 = vst [vmem:[#allocation2 + $0x18] sm:$0xff] %v72
      %78 = vst [vmem:[#allocation2 + $0x20] sm:$0xff] %v72
      %79 = vst [vmem:[#allocation2 + $0x28] sm:$0xff] %v72
      %80 = vst [vmem:[#allocation2 + $0x30] sm:$0xff] %v72
      %81 = vst [vmem:[#allocation2 + $0x38] sm:$0xff] %v72
      %82 = vst [vmem:[#allocation2 + $0x40] sm:$0xff] %v72
      %83 = vst [vmem:[#allocation2 + $0x48] sm:$0xff] %v72
      %84 = vst [vmem:[#allocation2 + $0x50] sm:$0xff] %v72
      %85 = vst [vmem:[#allocation2 + $0x58] sm:$0xff] %v72
      %86 = vst [vmem:[#allocation2 + $0x60] sm:$0xff] %v72
      %87 = vst [vmem:[#allocation2 + $0x68] sm:$0xff] %v72
      %88 = vst [vmem:[#allocation2 + $0x70] sm:$0xff] %v72
      %89 = vst [vmem:[#allocation2 + $0x78] sm:$0xff] %v72
    $region37: #{tpu_custom_call.1} parent=1 // pred_fallthru
      _
    %v90 = vld [vmem:[#allocation3] sm:$0xf]
    %v91 = vld [vmem:[#allocation3 + $0x4] sm:$0xf]
    %v92 = vld [vmem:[#allocation3 + $0x8] sm:$0xf]
    %v93 = vld [vmem:[#allocation3 + $0xc] sm:$0xf]
    %v94 = vld [vmem:[#allocation3 + $0x10] sm:$0xf]
    %v95 = vld [vmem:[#allocation3 + $0x14] sm:$0xf]
    %v96 = vld [vmem:[#allocation3 + $0x18] sm:$0xf]
    %v97 = vld [vmem:[#allocation3 + $0x1c] sm:$0xf]
    %v98 = vld [vmem:[#allocation3 + $0x20] sm:$0xf]
    %v99 = vld [vmem:[#allocation3 + $0x24] sm:$0xf]
    %v100 = vld [vmem:[#allocation3 + $0x28] sm:$0xf]
    %v101 = vld [vmem:[#allocation3 + $0x2c] sm:$0xf]
    %v102 = vld [vmem:[#allocation3 + $0x30] sm:$0xf]
    %v103 = vld [vmem:[#allocation3 + $0x34] sm:$0xf]
    %v104 = vld [vmem:[#allocation3 + $0x38] sm:$0xf]
    %v105 = vld [vmem:[#allocation3 + $0x3c] sm:$0xf]
    %v106 = vld [vmem:[#allocation6] sm:$0xf]
    %v107 = vld [vmem:[#allocation6 + $0x4] sm:$0xf]
    %v108 = vld [vmem:[#allocation6 + $0x8] sm:$0xf]
    %v109 = vld [vmem:[#allocation6 + $0xc] sm:$0xf]
    %v110 = vld [vmem:[#allocation6 + $0x10] sm:$0xf]
    %v111 = vld [vmem:[#allocation6 + $0x14] sm:$0xf]
    %v112 = vld [vmem:[#allocation6 + $0x18] sm:$0xf]
    %v113 = vld [vmem:[#allocation6 + $0x1c] sm:$0xf]
    %v114 = vld [vmem:[#allocation6 + $0x20] sm:$0xf]
    %v115 = vld [vmem:[#allocation6 + $0x24] sm:$0xf]
    %v116 = vld [vmem:[#allocation6 + $0x28] sm:$0xf]
    %v117 = vld [vmem:[#allocation6 + $0x2c] sm:$0xf]
    %v118 = vld [vmem:[#allocation6 + $0x30] sm:$0xf]
    %v119 = vld [vmem:[#allocation6 + $0x34] sm:$0xf]
    %v120 = vld [vmem:[#allocation6 + $0x38] sm:$0xf]
    %v121 = vld [vmem:[#allocation6 + $0x3c] sm:$0xf]
    %v122 = vld [vmem:[%s2] sm:$0x1]
    %v124 = vlaneseq
    %v125 = vshrl.u32 %v124, 7
    %v126 = vsub.s32 0, %v125
    %v127 = vrot.slane %v122, %v126
    %v145 = vunpack.c.l.b16 %v90
    %v146 = vunpack.c.l.b16 %v91
    %v147 = vunpack.c.l.b16 %v92
    %v148 = vunpack.c.l.b16 %v93
    %v149 = vunpack.c.l.b16 %v94
    %v150 = vunpack.c.l.b16 %v95
    %v151 = vunpack.c.l.b16 %v96
    %v152 = vunpack.c.l.b16 %v97
    %v153 = vunpack.c.l.b16 %v98
    %v154 = vunpack.c.l.b16 %v99
    %v155 = vunpack.c.l.b16 %v100
    %v156 = vunpack.c.l.b16 %v101
    %v157 = vunpack.c.l.b16 %v102
    %v158 = vunpack.c.l.b16 %v103
    %v159 = vunpack.c.l.b16 %v104
    %v160 = vunpack.c.l.b16 %v105
    %v161 = vpack.c.b16 %v146, %v145
    %v162 = vpack.c.b16 %v148, %v147
    %v163 = vpack.c.b16 %v150, %v149
    %v164 = vpack.c.b16 %v152, %v151
    %v165 = vpack.c.b16 %v154, %v153
    %v166 = vpack.c.b16 %v156, %v155
    %v167 = vpack.c.b16 %v158, %v157
    %v168 = vpack.c.b16 %v160, %v159
    %v193 = vunpack.c.l.b16 %v106
    %v194 = vunpack.c.l.b16 %v107
    %v195 = vunpack.c.l.b16 %v108
    %v196 = vunpack.c.l.b16 %v109
    %v197 = vunpack.c.l.b16 %v110
    %v198 = vunpack.c.l.b16 %v111
    %v199 = vunpack.c.l.b16 %v112
    %v200 = vunpack.c.l.b16 %v113
    %v201 = vunpack.c.l.b16 %v114
    %v202 = vunpack.c.l.b16 %v115
    %v203 = vunpack.c.l.b16 %v116
    %v204 = vunpack.c.l.b16 %v117
    %v205 = vunpack.c.l.b16 %v118
    %v206 = vunpack.c.l.b16 %v119
    %v207 = vunpack.c.l.b16 %v120
    %v208 = vunpack.c.l.b16 %v121
    %v209 = vpack.c.b16 %v194, %v193
    %v210 = vpack.c.b16 %v196, %v195
    %v211 = vpack.c.b16 %v198, %v197
    %v212 = vpack.c.b16 %v200, %v199
    %v213 = vpack.c.b16 %v202, %v201
    %v214 = vpack.c.b16 %v204, %v203
    %v215 = vpack.c.b16 %v206, %v205
    %v216 = vpack.c.b16 %v208, %v207
    %225 = vmatprep.subr.bf16.mxu0 0
    %226 = vmatpush1.bf16.msra.mxu0 %v209
    %227 = vmatprep.subr.bf16.mxu0 0
    %228 = vmatpush1.bf16.msra.mxu0 %v210
    %229 = vmatprep.subr.bf16.mxu0 0
    %230 = vmatpush1.bf16.msra.mxu0 %v211
    %231 = vmatprep.subr.bf16.mxu0 0
    %232 = vmatpush1.bf16.msra.mxu0 %v212
    %233 = vmatprep.subr.bf16.mxu0 0
    %234 = vmatpush1.bf16.msra.mxu0 %v213
    %235 = vmatprep.subr.bf16.mxu0 0
    %236 = vmatpush1.bf16.msra.mxu0 %v214
    %237 = vmatprep.subr.bf16.mxu0 0
    %238 = vmatpush1.bf16.msra.mxu0 %v215
    %239 = vmatprep.subr.bf16.mxu0 0
    %240 = vmatpush1.bf16.msra.mxu0 %v216
    %241 = vmatprep.subr.bf16.mxu0 0
    %242 = vmatpush1.bf16.msra.mxu0 0
    %243 = vmatprep.subr.bf16.mxu0 0
    %244 = vmatpush1.bf16.msra.mxu0 0
    %245 = vmatprep.subr.bf16.mxu0 0
    %246 = vmatpush1.bf16.msra.mxu0 0
    %247 = vmatprep.subr.bf16.mxu0 0
    %248 = vmatpush1.bf16.msra.mxu0 0
    %249 = vmatprep.subr.bf16.mxu0 0
    %250 = vmatpush1.bf16.msra.mxu0 0
    %251 = vmatprep.subr.bf16.mxu0 0
    %252 = vmatpush1.bf16.msra.mxu0 0
    %253 = vmatprep.subr.bf16.mxu0 0
    %254 = vmatpush1.bf16.msra.mxu0 0
    %255 = vmatprep.subr.bf16.mxu0 0
    %256 = vmatpush1.bf16.msra.mxu0 0
    %257 = vmatprep.mubr.bf16.mxu0 0
    %258 = vmatmul.mubr.bf16.gmra.mrb[0].mxu0 %v161
    %v259 = vpop.f32.mrb[0].mxu0
    %v260 = vadd.f32 %v127, %v259
    %v261 = vpop.f32.mrb[0].mxu0
    %v262 = vpop.f32.mrb[0].mxu0
    %v263 = vadd.f32 %v127, %v262
    %v264 = vpop.f32.mrb[0].mxu0
    %265 = vmatprep.mubr.bf16.mxu0 0
    %266 = vmatmul.mubr.bf16.gmra.mrb[0].mxu0 %v162
    %v267 = vpop.f32.mrb[0].mxu0
    %v268 = vadd.f32 %v127, %v267
    %v269 = vpop.f32.mrb[0].mxu0
    %v270 = vpop.f32.mrb[0].mxu0
    %v271 = vadd.f32 %v127, %v270
    %v272 = vpop.f32.mrb[0].mxu0
    %273 = vmatprep.mubr.bf16.mxu0 0
    %274 = vmatmul.mubr.bf16.gmra.mrb[0].mxu0 %v163
    %v275 = vpop.f32.mrb[0].mxu0
    %v276 = vadd.f32 %v127, %v275
    %v277 = vpop.f32.mrb[0].mxu0
    %v278 = vpop.f32.mrb[0].mxu0
    %v279 = vadd.f32 %v127, %v278
    %v280 = vpop.f32.mrb[0].mxu0
    %281 = vmatprep.mubr.bf16.mxu0 0
    %282 = vmatmul.mubr.bf16.gmra.mrb[0].mxu0 %v164
    %v283 = vpop.f32.mrb[0].mxu0
    %v284 = vadd.f32 %v127, %v283
    %v285 = vpop.f32.mrb[0].mxu0
    %v286 = vpop.f32.mrb[0].mxu0
    %v287 = vadd.f32 %v127, %v286
    %v288 = vpop.f32.mrb[0].mxu0
    %289 = vmatprep.mubr.bf16.mxu0 0
    %290 = vmatmul.mubr.bf16.gmra.mrb[0].mxu0 %v165
    %v291 = vpop.f32.mrb[0].mxu0
    %v292 = vadd.f32 %v127, %v291
    %v293 = vpop.f32.mrb[0].mxu0
    %v294 = vpop.f32.mrb[0].mxu0
    %v295 = vadd.f32 %v127, %v294
    %v296 = vpop.f32.mrb[0].mxu0
    %297 = vmatprep.mubr.bf16.mxu0 0
    %298 = vmatmul.mubr.bf16.gmra.mrb[0].mxu0 %v166
    %v299 = vpop.f32.mrb[0].mxu0
    %v300 = vadd.f32 %v127, %v299
    %v301 = vpop.f32.mrb[0].mxu0
    %v302 = vpop.f32.mrb[0].mxu0
    %v303 = vadd.f32 %v127, %v302
    %v304 = vpop.f32.mrb[0].mxu0
    %305 = vmatprep.mubr.bf16.mxu0 0
    %306 = vmatmul.mubr.bf16.gmra.mrb[0].mxu0 %v167
    %v307 = vpop.f32.mrb[0].mxu0
    %v308 = vadd.f32 %v127, %v307
    %v309 = vpop.f32.mrb[0].mxu0
    %v310 = vpop.f32.mrb[0].mxu0
    %v311 = vadd.f32 %v127, %v310
    %v312 = vpop.f32.mrb[0].mxu0
    %313 = vmatprep.mubr.bf16.mxu0 0
    %314 = vmatmul.mubr.bf16.gmra.mrb[0].mxu0 %v168
    %v315 = vpop.f32.mrb[0].mxu0
    %v316 = vadd.f32 %v127, %v315
    %v317 = vpop.f32.mrb[0].mxu0
    %v318 = vpop.f32.mrb[0].mxu0
    %v319 = vadd.f32 %v127, %v318
    %v320 = vpop.f32.mrb[0].mxu0
    %321 = vdwg.mxu0
    %v322 = vmax.f32 %v260, 0.0
    %v323 = vmax.f32 %v263, 0.0
    %v324 = vmax.f32 %v268, 0.0
    %v325 = vmax.f32 %v271, 0.0
    %v326 = vmax.f32 %v276, 0.0
    %v327 = vmax.f32 %v279, 0.0
    %v328 = vmax.f32 %v284, 0.0
    %v329 = vmax.f32 %v287, 0.0
    %v330 = vmax.f32 %v292, 0.0
    %v331 = vmax.f32 %v295, 0.0
    %v332 = vmax.f32 %v300, 0.0
    %v333 = vmax.f32 %v303, 0.0
    %v334 = vmax.f32 %v308, 0.0
    %v335 = vmax.f32 %v311, 0.0
    %v336 = vmax.f32 %v316, 0.0
    %v337 = vmax.f32 %v319, 0.0
    %v338 = vld [vmem:[#allocation2] sm:$0xff]
    %v339 = vld [vmem:[#allocation2 + $0x8] sm:$0xff]
    %v340 = vld [vmem:[#allocation2 + $0x10] sm:$0xff]
    %v341 = vld [vmem:[#allocation2 + $0x18] sm:$0xff]
    %v342 = vld [vmem:[#allocation2 + $0x20] sm:$0xff]
    %v343 = vld [vmem:[#allocation2 + $0x28] sm:$0xff]
    %v344 = vld [vmem:[#allocation2 + $0x30] sm:$0xff]
    %v345 = vld [vmem:[#allocation2 + $0x38] sm:$0xff]
    %v346 = vld [vmem:[#allocation2 + $0x40] sm:$0xff]
    %v347 = vld [vmem:[#allocation2 + $0x48] sm:$0xff]
    %v348 = vld [vmem:[#allocation2 + $0x50] sm:$0xff]
    %v349 = vld [vmem:[#allocation2 + $0x58] sm:$0xff]
    %v350 = vld [vmem:[#allocation2 + $0x60] sm:$0xff]
    %v351 = vld [vmem:[#allocation2 + $0x68] sm:$0xff]
    %v352 = vld [vmem:[#allocation2 + $0x70] sm:$0xff]
    %v353 = vld [vmem:[#allocation2 + $0x78] sm:$0xff]
    %v354 = vpack.c.bf16 %v323, %v322
    %v355 = vpack.c.bf16 %v325, %v324
    %v356 = vpack.c.bf16 %v327, %v326
    %v357 = vpack.c.bf16 %v329, %v328
    %v358 = vpack.c.bf16 %v331, %v330
    %v359 = vpack.c.bf16 %v333, %v332
    %v360 = vpack.c.bf16 %v335, %v334
    %v361 = vpack.c.bf16 %v337, %v336
    %v362 = vld [vmem:[#allocation8] sm:$0xf]
    %v363 = vld [vmem:[#allocation8 + $0x4] sm:$0xf]
    %v364 = vld [vmem:[#allocation8 + $0x8] sm:$0xf]
    %v365 = vld [vmem:[#allocation8 + $0xc] sm:$0xf]
    %v366 = vld [vmem:[#allocation8 + $0x10] sm:$0xf]
    %v367 = vld [vmem:[#allocation8 + $0x14] sm:$0xf]
    %v368 = vld [vmem:[#allocation8 + $0x18] sm:$0xf]
    %v369 = vld [vmem:[#allocation8 + $0x1c] sm:$0xf]
    %v370 = vld [vmem:[#allocation8 + $0x20] sm:$0xf]
    %v371 = vld [vmem:[#allocation8 + $0x24] sm:$0xf]
    %v372 = vld [vmem:[#allocation8 + $0x28] sm:$0xf]
    %v373 = vld [vmem:[#allocation8 + $0x2c] sm:$0xf]
    %v374 = vld [vmem:[#allocation8 + $0x30] sm:$0xf]
    %v375 = vld [vmem:[#allocation8 + $0x34] sm:$0xf]
    %v376 = vld [vmem:[#allocation8 + $0x38] sm:$0xf]
    %v377 = vld [vmem:[#allocation8 + $0x3c] sm:$0xf]
    %v394 = vunpack.c.l.b16 %v362
    %v395 = vunpack.c.l.b16 %v363
    %v396 = vunpack.c.l.b16 %v364
    %v397 = vunpack.c.l.b16 %v365
    %v398 = vunpack.c.l.b16 %v366
    %v399 = vunpack.c.l.b16 %v367
    %v400 = vunpack.c.l.b16 %v368
    %v401 = vunpack.c.l.b16 %v369
    %v402 = vunpack.c.l.b16 %v370
    %v403 = vunpack.c.l.b16 %v371
    %v404 = vunpack.c.l.b16 %v372
    %v405 = vunpack.c.l.b16 %v373
    %v406 = vunpack.c.l.b16 %v374
    %v407 = vunpack.c.l.b16 %v375
    %v408 = vunpack.c.l.b16 %v376
    %v409 = vunpack.c.l.b16 %v377
    %v410 = vpack.c.b16 %v395, %v394
    %v411 = vpack.c.b16 %v397, %v396
    %v412 = vpack.c.b16 %v399, %v398
    %v413 = vpack.c.b16 %v401, %v400
    %v414 = vpack.c.b16 %v403, %v402
    %v415 = vpack.c.b16 %v405, %v404
    %v416 = vpack.c.b16 %v407, %v406
    %v417 = vpack.c.b16 %v409, %v408
    %426 = vmatprep.subr.bf16.mxu0 0
    %427 = vmatpush1.bf16.msra.mxu0 %v410
    %428 = vmatprep.subr.bf16.mxu0 0
    %429 = vmatpush1.bf16.msra.mxu0 %v411
    %430 = vmatprep.subr.bf16.mxu0 0
    %431 = vmatpush1.bf16.msra.mxu0 %v412
    %432 = vmatprep.subr.bf16.mxu0 0
    %433 = vmatpush1.bf16.msra.mxu0 %v413
    %434 = vmatprep.subr.bf16.mxu0 0
    %435 = vmatpush1.bf16.msra.mxu0 %v414
    %436 = vmatprep.subr.bf16.mxu0 0
    %437 = vmatpush1.bf16.msra.mxu0 %v415
    %438 = vmatprep.subr.bf16.mxu0 0
    %439 = vmatpush1.bf16.msra.mxu0 %v416
    %440 = vmatprep.subr.bf16.mxu0 0
    %441 = vmatpush1.bf16.msra.mxu0 %v417
    %442 = vmatprep.subr.bf16.mxu0 0
    %443 = vmatpush1.bf16.msra.mxu0 0
    %444 = vmatprep.subr.bf16.mxu0 0
    %445 = vmatpush1.bf16.msra.mxu0 0
    %446 = vmatprep.subr.bf16.mxu0 0
    %447 = vmatpush1.bf16.msra.mxu0 0
    %448 = vmatprep.subr.bf16.mxu0 0
    %449 = vmatpush1.bf16.msra.mxu0 0
    %450 = vmatprep.subr.bf16.mxu0 0
    %451 = vmatpush1.bf16.msra.mxu0 0
    %452 = vmatprep.subr.bf16.mxu0 0
    %453 = vmatpush1.bf16.msra.mxu0 0
    %454 = vmatprep.subr.bf16.mxu0 0
    %455 = vmatpush1.bf16.msra.mxu0 0
    %456 = vmatprep.subr.bf16.mxu0 0
    %457 = vmatpush1.bf16.msra.mxu0 0
    %458 = vmatprep.mubr.bf16.mxu0 0
    %459 = vmatmul.mubr.bf16.gmra.mrb[0].mxu0 %v354
    %v460 = vpop.f32.mrb[0].mxu0
    %v461 = vadd.f32 0.0, %v460
    %v462 = vpop.f32.mrb[0].mxu0
    %v463 = vpop.f32.mrb[0].mxu0
    %v464 = vadd.f32 0.0, %v463
    %v465 = vpop.f32.mrb[0].mxu0
    %466 = vmatprep.mubr.bf16.mxu0 0
    %467 = vmatmul.mubr.bf16.gmra.mrb[0].mxu0 %v355
    %v468 = vpop.f32.mrb[0].mxu0
    %v469 = vadd.f32 0.0, %v468
    %v470 = vpop.f32.mrb[0].mxu0
    %v471 = vpop.f32.mrb[0].mxu0
    %v472 = vadd.f32 0.0, %v471
    %v473 = vpop.f32.mrb[0].mxu0
    %474 = vmatprep.mubr.bf16.mxu0 0
    %475 = vmatmul.mubr.bf16.gmra.mrb[0].mxu0 %v356
    %v476 = vpop.f32.mrb[0].mxu0
    %v477 = vadd.f32 0.0, %v476
    %v478 = vpop.f32.mrb[0].mxu0
    %v479 = vpop.f32.mrb[0].mxu0
    %v480 = vadd.f32 0.0, %v479
    %v481 = vpop.f32.mrb[0].mxu0
    %482 = vmatprep.mubr.bf16.mxu0 0
    %483 = vmatmul.mubr.bf16.gmra.mrb[0].mxu0 %v357
    %v484 = vpop.f32.mrb[0].mxu0
    %v485 = vadd.f32 0.0, %v484
    %v486 = vpop.f32.mrb[0].mxu0
    %v487 = vpop.f32.mrb[0].mxu0
    %v488 = vadd.f32 0.0, %v487
    %v489 = vpop.f32.mrb[0].mxu0
    %490 = vmatprep.mubr.bf16.mxu0 0
    %491 = vmatmul.mubr.bf16.gmra.mrb[0].mxu0 %v358
    %v492 = vpop.f32.mrb[0].mxu0
    %v493 = vadd.f32 0.0, %v492
    %v494 = vpop.f32.mrb[0].mxu0
    %v495 = vpop.f32.mrb[0].mxu0
    %v496 = vadd.f32 0.0, %v495
    %v497 = vpop.f32.mrb[0].mxu0
    %498 = vmatprep.mubr.bf16.mxu0 0
    %499 = vmatmul.mubr.bf16.gmra.mrb[0].mxu0 %v359
    %v500 = vpop.f32.mrb[0].mxu0
    %v501 = vadd.f32 0.0, %v500
    %v502 = vpop.f32.mrb[0].mxu0
    %v503 = vpop.f32.mrb[0].mxu0
    %v504 = vadd.f32 0.0, %v503
    %v505 = vpop.f32.mrb[0].mxu0
    %506 = vmatprep.mubr.bf16.mxu0 0
    %507 = vmatmul.mubr.bf16.gmra.mrb[0].mxu0 %v360
    %v508 = vpop.f32.mrb[0].mxu0
    %v509 = vadd.f32 0.0, %v508
    %v510 = vpop.f32.mrb[0].mxu0
    %v511 = vpop.f32.mrb[0].mxu0
    %v512 = vadd.f32 0.0, %v511
    %v513 = vpop.f32.mrb[0].mxu0
    %514 = vmatprep.mubr.bf16.mxu0 0
    %515 = vmatmul.mubr.bf16.gmra.mrb[0].mxu0 %v361
    %v516 = vpop.f32.mrb[0].mxu0
    %v517 = vadd.f32 0.0, %v516
    %v518 = vpop.f32.mrb[0].mxu0
    %v519 = vpop.f32.mrb[0].mxu0
    %v520 = vadd.f32 0.0, %v519
    %v521 = vpop.f32.mrb[0].mxu0
    %522 = vdwg.mxu0
    %v523 = vadd.f32 %v338, %v461
    %v524 = vadd.f32 %v339, %v464
    %v525 = vadd.f32 %v340, %v469
    %v526 = vadd.f32 %v341, %v472
    %v527 = vadd.f32 %v342, %v477
    %v528 = vadd.f32 %v343, %v480
    %v529 = vadd.f32 %v344, %v485
    %v530 = vadd.f32 %v345, %v488
    %v531 = vadd.f32 %v346, %v493
    %v532 = vadd.f32 %v347, %v496
    %v533 = vadd.f32 %v348, %v501
    %v534 = vadd.f32 %v349, %v504
    %v535 = vadd.f32 %v350, %v509
    %v536 = vadd.f32 %v351, %v512
    %v537 = vadd.f32 %v352, %v517
    %v538 = vadd.f32 %v353, %v520
    %539 = vst [vmem:[#allocation2] sm:$0xff] %v523
    %540 = vst [vmem:[#allocation2 + $0x8] sm:$0xff] %v524
    %541 = vst [vmem:[#allocation2 + $0x10] sm:$0xff] %v525
    %542 = vst [vmem:[#allocation2 + $0x18] sm:$0xff] %v526
    %543 = vst [vmem:[#allocation2 + $0x20] sm:$0xff] %v527
    %544 = vst [vmem:[#allocation2 + $0x28] sm:$0xff] %v528
    %545 = vst [vmem:[#allocation2 + $0x30] sm:$0xff] %v529
    %546 = vst [vmem:[#allocation2 + $0x38] sm:$0xff] %v530
    %547 = vst [vmem:[#allocation2 + $0x40] sm:$0xff] %v531
    %548 = vst [vmem:[#allocation2 + $0x48] sm:$0xff] %v532
    %549 = vst [vmem:[#allocation2 + $0x50] sm:$0xff] %v533
    %550 = vst [vmem:[#allocation2 + $0x58] sm:$0xff] %v534
    %551 = vst [vmem:[#allocation2 + $0x60] sm:$0xff] %v535
    %552 = vst [vmem:[#allocation2 + $0x68] sm:$0xff] %v536
    %553 = vst [vmem:[#allocation2 + $0x70] sm:$0xff] %v537
    %554 = vst [vmem:[#allocation2 + $0x78] sm:$0xff] %v538
    // Predicated region
    $region38: #{tpu_custom_call.1} parent=1 // pred_check
      %p555 = pneg %p63
    $region39: #{tpu_custom_call.1} parent=1 // pred_check_branch
      %557 = sbr.rel (%p555) target = $region41
    $region40: #{tpu_custom_call.1} parent=1 // pred_region
      %v558 = vld [vmem:[#allocation2] sm:$0xff]
      %v559 = vld [vmem:[#allocation2 + $0x8] sm:$0xff]
      %v560 = vld [vmem:[#allocation2 + $0x10] sm:$0xff]
      %v561 = vld [vmem:[#allocation2 + $0x18] sm:$0xff]
      %v562 = vld [vmem:[#allocation2 + $0x20] sm:$0xff]
      %v563 = vld [vmem:[#allocation2 + $0x28] sm:$0xff]
      %v564 = vld [vmem:[#allocation2 + $0x30] sm:$0xff]
      %v565 = vld [vmem:[#allocation2 + $0x38] sm:$0xff]
      %v566 = vld [vmem:[#allocation2 + $0x40] sm:$0xff]
      %v567 = vld [vmem:[#allocation2 + $0x48] sm:$0xff]
      %v568 = vld [vmem:[#allocation2 + $0x50] sm:$0xff]
      %v569 = vld [vmem:[#allocation2 + $0x58] sm:$0xff]
      %v570 = vld [vmem:[#allocation2 + $0x60] sm:$0xff]
      %v571 = vld [vmem:[#allocation2 + $0x68] sm:$0xff]
      %v572 = vld [vmem:[#allocation2 + $0x70] sm:$0xff]
      %v573 = vld [vmem:[#allocation2 + $0x78] sm:$0xff]
      %574 = vst [vmem:[#allocation9] sm:$0xff] %v558
      %575 = vst [vmem:[#allocation9 + $0x8] sm:$0xff] %v559
      %576 = vst [vmem:[#allocation9 + $0x10] sm:$0xff] %v560
      %577 = vst [vmem:[#allocation9 + $0x18] sm:$0xff] %v561
      %578 = vst [vmem:[#allocation9 + $0x20] sm:$0xff] %v562
      %579 = vst [vmem:[#allocation9 + $0x28] sm:$0xff] %v563
      %580 = vst [vmem:[#allocation9 + $0x30] sm:$0xff] %v564
      %581 = vst [vmem:[#allocation9 + $0x38] sm:$0xff] %v565
      %582 = vst [vmem:[#allocation9 + $0x40] sm:$0xff] %v566
      %583 = vst [vmem:[#allocation9 + $0x48] sm:$0xff] %v567
      %584 = vst [vmem:[#allocation9 + $0x50] sm:$0xff] %v568
      %585 = vst [vmem:[#allocation9 + $0x58] sm:$0xff] %v569
      %586 = vst [vmem:[#allocation9 + $0x60] sm:$0xff] %v570
      %587 = vst [vmem:[#allocation9 + $0x68] sm:$0xff] %v571
      %588 = vst [vmem:[#allocation9 + $0x70] sm:$0xff] %v572
      %589 = vst [vmem:[#allocation9 + $0x78] sm:$0xff] %v573
    $region41: #{tpu_custom_call.1} parent=1 // pred_fallthru
      _
    // Predicated region
    $region42: #{tpu_custom_call.1} parent=1 // pred_check
      _
    $region43: #{tpu_custom_call.1} parent=1 // pred_check_branch
      %591 = sbr.rel (0) target = $region45
    $region44: #{tpu_custom_call.1} parent=1 // pred_region
      %s593 = ssub.s32 2048, 2048
      %594 = vsyncadd [#allocation5], %s593
      %s595 = sshll.u32 [#allocation9], 4
      %s596 = int_to_ptr.vmem [resolvable:$true] %s595
      %601 = dma.vmem_to_hbm [thread:$0]  %s596, 2048, %s5, [#allocation5], 128, 128, 8
    $region45: #{tpu_custom_call.1} parent=1 // pred_fallthru
      _
    // Predicated region
    $region46: #{tpu_custom_call.1} parent=1 // pred_check
      _
    $region47: #{tpu_custom_call.1} parent=1 // pred_check_branch
      %603 = sbr.rel (0) target = $region49
    $region48: #{tpu_custom_call.1} parent=1 // pred_region
      %604 = dma.done [#allocation5], 2048
    $region49: #{tpu_custom_call.1} parent=1 // pred_fallthru
      _
    %605 = vsyncpa [#allocation4], 1
    %606 = vsyncpa [#allocation7], 1
    %607 = vsyncpa [#allocation5], 1

</llo_original>
